<compile_context>
chip_gen: v6e
topology: v6e:2x2x1
jax: 0.10.0
libtpu: 0.0.40
codegen_flags: <defaults>
</compile_context>

<pallas_src>
import functools

import numpy as np
import jax
import jax.numpy as jnp
from jax.experimental import pallas as pl
from jax.experimental.pallas import tpu as pltpu

_BN_EPS = 1e-5
_VMEM_LIMIT = 32 * 1024 * 1024   # conservative; valid on v5e/v6e/v7x


# ---------------------------------------------------------------------------
# Host-side weight preprocessing (one-time layout transform, not hot path)
# ---------------------------------------------------------------------------
def _band_weights(w_hwio, w_in, stride, pad, dtype):
    """Fold the KW taps and the W zero-padding of a conv into a banded matrix.

    w_hwio : (KH, KW, Cin, Cout)
    returns: (KH, W_in*Cin, W_out*Cout) such that for every output row h
        y[h, :] = sum_kh  x_rows[h*stride + kh, :] @ band[kh]
    where x_rows is the H-padded input reshaped to (H_pad, W_in*Cin).
    """
    kh, kw, cin, cout = w_hwio.shape
    w_out = (w_in + 2 * pad - kw) // stride + 1
    band = np.zeros((kh, w_in * cin, w_out * cout), np.float32)
    wnp = np.asarray(w_hwio, np.float32)
    for wo in range(w_out):
        for k in range(kw):
            wi = wo * stride + k - pad
            if 0 <= wi < w_in:                      # taps outside = zero pad
                band[:, wi * cin:(wi + 1) * cin,
                     wo * cout:(wo + 1) * cout] = wnp[:, k]
    return jnp.asarray(band, dtype)


def _fold_bn(stats_rows, gamma, beta, n, h, w, c):
    """Per-sample (sum, sum^2) lane partials -> folded per-lane scale/bias rows.

    BatchNorm2d training mode: biased variance over (N, H, W), eps=1e-5.
    var = E[x^2] - E[x]^2 ; scale = g*rsqrt(var+eps) ; bias = b - mean*scale.
    """
    s = jnp.sum(stats_rows[:, 0, :].reshape(n, w, c), axis=(0, 1))
    q = jnp.sum(stats_rows[:, 1, :].reshape(n, w, c), axis=(0, 1))
    count = n * h * w
    mean = s / count
    var = jnp.maximum(q / count - mean * mean, 0.0)
    scale = gamma.reshape(-1) * jax.lax.rsqrt(var + _BN_EPS)
    bias = beta.reshape(-1) - mean * scale
    return (jnp.tile(scale, w).reshape(1, w * c),
            jnp.tile(bias, w).reshape(1, w * c))


# ---------------------------------------------------------------------------
# Pallas kernels (one batch sample per grid step)
# ---------------------------------------------------------------------------
def _conv_stats_kernel(x_ref, band_ref, y_ref, stats_ref, *, stride, h_out):
    """conv1 as KH banded bf16 matmuls (f32 accum) + per-sample BN partials."""
    kh = band_ref.shape[0]
    span = (h_out - 1) * stride + 1
    x = x_ref[0].astype(jnp.bfloat16)                        # (H_pad, W*Cin)
    acc = jnp.dot(x[0:span:stride], band_ref[0],
                  preferred_element_type=jnp.float32)        # init = first tap
    for k in range(1, kh):
        acc = acc + jnp.dot(x[k:k + span:stride], band_ref[k],
                            preferred_element_type=jnp.float32)
    y_ref[0] = acc
    # per-(w,c)-lane partial sums; folded to per-channel stats in the wrapper
    stats_ref[0, 0:1, :] = jnp.sum(acc, axis=0, keepdims=True)
    stats_ref[0, 1:2, :] = jnp.sum(acc * acc, axis=0, keepdims=True)


def _bn_conv_stats_kernel(y1_ref, sc_ref, bi_ref, band_ref, y2_ref, stats_ref,
                          pad_scr, *, stride, pad, h_out):
    """BN1 (folded scale/bias FMA, f32) + ReLU + conv2 (bf16 MXU) + partials."""
    kh = band_ref.shape[0]
    h_in, wc = y1_ref.shape[1], y1_ref.shape[2]
    act = jnp.maximum(y1_ref[0] * sc_ref[...] + bi_ref[...], 0.0)
    # bf16 H-halo scratch: zero only the 2*pad border rows, store the interior.
    pad_scr[0:pad, :] = jnp.zeros((pad, wc), jnp.bfloat16)
    pad_scr[pad + h_in:pad + h_in + pad, :] = jnp.zeros((pad, wc), jnp.bfloat16)
    pad_scr[pad:pad + h_in, :] = act.astype(jnp.bfloat16)
    xp = pad_scr[...]
    span = (h_out - 1) * stride + 1
    acc = jnp.dot(xp[0:span:stride], band_ref[0],
                  preferred_element_type=jnp.float32)
    for k in range(1, kh):
        acc = acc + jnp.dot(xp[k:k + span:stride], band_ref[k],
                            preferred_element_type=jnp.float32)
    y2_ref[0] = acc
    stats_ref[0, 0:1, :] = jnp.sum(acc, axis=0, keepdims=True)
    stats_ref[0, 1:2, :] = jnp.sum(acc * acc, axis=0, keepdims=True)


def _bn_relu_add_kernel(y2_ref, sc_ref, bi_ref, res_ref, o_ref, *, row_off):
    """BN2 (folded FMA) + ReLU + residual add (residual sliced from its ref)."""
    h_out = y2_ref.shape[1]
    act = jnp.maximum(y2_ref[0] * sc_ref[...] + bi_ref[...], 0.0)
    res = res_ref[0, row_off:row_off + h_out, :].astype(jnp.float32)
    o_ref[0] = (act + res).astype(o_ref.dtype)


# ---------------------------------------------------------------------------
# Wrapper (PyTorch-compatible NCHW interface)
# ---------------------------------------------------------------------------
def resnet_block(x_nchw, w1, g1, b1, w2, g2, b2, stride=(1, 1), padding=1,
                 shortcut=None):
    n, cin, h, w = x_nchw.shape
    kdim = w1.shape[0]
    cmid = w1.shape[3]
    cout = w2.shape[3]
    s1, s2 = stride
    ho1 = (h + 2 * padding - kdim) // s1 + 1
    wo1 = (w + 2 * padding - kdim) // s1 + 1
    ho2 = (ho1 + 2 * padding - kdim) // s2 + 1
    wo2 = (wo1 + 2 * padding - kdim) // s2 + 1

    if shortcut is None and (cin != cout or ho2 != h or wo2 != w):
        raise ValueError(
            "shortcut=None requires the block output to match the input shape "
            f"(in=({cin},{h},{w}), out=({cout},{ho2},{wo2}))")

    # NCHW -> lane-dense (N, H, W*C); pad along H only (W padding lives inside
    # the banded weights).  In a full network this layout would be kept between
    # blocks and these transposes skipped.
    x2d = jnp.transpose(x_nchw, (0, 2, 3, 1)).reshape(n, h, w * cin)
    x2d_pad = jnp.pad(x2d, ((0, 0), (padding, padding), (0, 0)))

    band1 = _band_weights(w1, w, s1, padding, jnp.bfloat16)
    band2 = _band_weights(w2, wo1, s2, padding, jnp.bfloat16)

    cparams = pltpu.CompilerParams(dimension_semantics=("parallel",),
                                   vmem_limit_bytes=_VMEM_LIMIT)

    # ---- pass 1: conv1 + BN1 partial statistics ----------------------------
    y1_raw, stats1 = pl.pallas_call(
        functools.partial(_conv_stats_kernel, stride=s1, h_out=ho1),
        grid=(n,),
        in_specs=[
            pl.BlockSpec((1, h + 2 * padding, w * cin), lambda i: (i, 0, 0)),
            pl.BlockSpec((kdim, w * cin, wo1 * cmid), lambda i: (0, 0, 0)),
        ],
        out_specs=[
            pl.BlockSpec((1, ho1, wo1 * cmid), lambda i: (i, 0, 0)),
            pl.BlockSpec((1, 2, wo1 * cmid), lambda i: (i, 0, 0)),
        ],
        out_shape=[
            jax.ShapeDtypeStruct((n, ho1, wo1 * cmid), jnp.float32),
            jax.ShapeDtypeStruct((n, 2, wo1 * cmid), jnp.float32),
        ],
        compiler_params=cparams,
    )(x2d_pad, band1)

    scale1, bias1 = _fold_bn(stats1, g1, b1, n, ho1, wo1, cmid)

    # ---- pass 2: BN1 + ReLU + conv2 + BN2 partial statistics ----------------
    y2_raw, stats2 = pl.pallas_call(
        functools.partial(_bn_conv_stats_kernel, stride=s2, pad=padding,
                          h_out=ho2),
        grid=(n,),
        in_specs=[
            pl.BlockSpec((1, ho1, wo1 * cmid), lambda i: (i, 0, 0)),
            pl.BlockSpec((1, wo1 * cmid), lambda i: (0, 0)),
            pl.BlockSpec((1, wo1 * cmid), lambda i: (0, 0)),
            pl.BlockSpec((kdim, wo1 * cmid, wo2 * cout), lambda i: (0, 0, 0)),
        ],
        out_specs=[
            pl.BlockSpec((1, ho2, wo2 * cout), lambda i: (i, 0, 0)),
            pl.BlockSpec((1, 2, wo2 * cout), lambda i: (i, 0, 0)),
        ],
        out_shape=[
            jax.ShapeDtypeStruct((n, ho2, wo2 * cout), jnp.float32),
            jax.ShapeDtypeStruct((n, 2, wo2 * cout), jnp.float32),
        ],
        scratch_shapes=[pltpu.VMEM((ho1 + 2 * padding, wo1 * cmid),
                                   jnp.bfloat16)],
        compiler_params=cparams,
    )(y1_raw, scale1, bias1, band2)

    scale2, bias2 = _fold_bn(stats2, g2, b2, n, ho2, wo2, cout)

    # ---- pass 3: BN2 + ReLU + residual add ----------------------------------
    if shortcut is None:
        # residual = X: reuse the already H-padded input, slice interior rows
        # inside the kernel (saves a second full-activation HBM->VMEM DMA).
        res = x2d_pad
        row_off = padding
        res_rows, res_cols = h + 2 * padding, w * cin
    else:
        res = jnp.transpose(shortcut, (0, 2, 3, 1)).reshape(n, ho2, wo2 * cout)
        row_off = 0
        res_rows, res_cols = ho2, wo2 * cout

    out2d = pl.pallas_call(
        functools.partial(_bn_relu_add_kernel, row_off=row_off),
        grid=(n,),
        in_specs=[
            pl.BlockSpec((1, ho2, wo2 * cout), lambda i: (i, 0, 0)),
            pl.BlockSpec((1, wo2 * cout), lambda i: (0, 0)),
            pl.BlockSpec((1, wo2 * cout), lambda i: (0, 0)),
            pl.BlockSpec((1, res_rows, res_cols), lambda i: (i, 0, 0)),
        ],
        out_specs=pl.BlockSpec((1, ho2, wo2 * cout), lambda i: (i, 0, 0)),
        out_shape=jax.ShapeDtypeStruct((n, ho2, wo2 * cout), x_nchw.dtype),
        compiler_params=cparams,
    )(y2_raw, scale2, bias2, res)

    return jnp.transpose(out2d.reshape(n, ho2, wo2, cout), (0, 3, 1, 2))


# ---------------------------------------------------------------------------
# Pure-JAX reference (same numerics: bf16 conv operands, f32 accum / BN math)
# ---------------------------------------------------------------------------
def _reference(x_nchw, w1, g1, b1, w2, g2, b2, stride, padding):
    x = jnp.transpose(x_nchw, (0, 2, 3, 1))

    def conv(y, wgt, s):
        return jax.lax.conv_general_dilated(
            y.astype(jnp.bfloat16), wgt.astype(jnp.bfloat16),
            window_strides=(s, s), padding=[(padding, padding)] * 2,
            dimension_numbers=('NHWC', 'HWIO', 'NHWC'),
            preferred_element_type=jnp.float32)

    def bn_relu(y, g, b):
        mean = jnp.mean(y, axis=(0, 1, 2), keepdims=True)
        var = jnp.mean((y - mean) ** 2, axis=(0, 1, 2), keepdims=True)
        out = (y - mean) * jax.lax.rsqrt(var + _BN_EPS) * g.reshape(1, 1, 1, -1) \
              + b.reshape(1, 1, 1, -1)
        return jnp.maximum(out, 0.0)

    y = bn_relu(conv(x, w1, stride[0]), g1, b1)
    y = bn_relu(conv(y, w2, stride[1]), g2, b2)
    return jnp.transpose(y + x, (0, 3, 1, 2))


if __name__ == "__main__":
    key = jax.random.PRNGKey(0)
    kx, k1, k2 = jax.random.split(key, 3)

    # Small shapes consistent with _Block(kernel_dim=3, n_filters=4,
    # in_channels=4, stride=(1, 1), padding=1)
    N, Cin, H, W = 2, 4, 16, 16
    n_filters, kdim, padding = 4, 3, 1
    stride = (1, 1)

    x = jax.random.normal(kx, (N, Cin, H, W), jnp.float32)
    w1 = 0.1 * jax.random.normal(k1, (kdim, kdim, Cin, n_filters), jnp.float32)
    w2 = 0.1 * jax.random.normal(k2, (kdim, kdim, n_filters, n_filters),
                                 jnp.float32)
    # nn.BatchNorm2d default init: weight=1, bias=0
    g1 = jnp.ones((1, n_filters), jnp.float32)
    b1 = jnp.zeros((1, n_filters), jnp.float32)
    g2 = jnp.ones((1, n_filters), jnp.float32)
    b2 = jnp.zeros((1, n_filters), jnp.float32)

    out = resnet_block(x, w1, g1, b1, w2, g2, b2, stride=stride,
                       padding=padding)
    out = jax.block_until_ready(out)

    ref = _reference(x, w1, g1, b1, w2, g2, b2, stride, padding)
    assert out.shape == (N, n_filters, H, W), out.shape
    err = float(jnp.max(jnp.abs(out - ref)))
    assert err < 1e-2, err

    print("KERNEL_OK")
</pallas_src>

<mosaic_0001>
module attributes {stable_mosaic.version = 11 : i64} {
  func.func @_conv_stats_kernel(%arg0: i32, %arg1: memref<1x18x64xf32, #tpu.memory_space<vmem>>, %arg2: memref<3x64x64xbf16, #tpu.memory_space<vmem>>, %arg3: memref<1x16x64xf32, #tpu.memory_space<vmem>>, %arg4: memref<1x2x64xf32, #tpu.memory_space<vmem>>) attributes {dimension_semantics = [#tpu.dimension_semantics<parallel>], iteration_bounds = array<i64: 2>, scalar_prefetch = 0 : i64, scratch_operands = 0 : i64, tpu.core_type = #tpu.core_type<tc>, window_params = [{transform_indices = @transform_0, window_bounds = array<i64: 1, 18, 64>}, {pipeline_mode = #tpu.pipeline_mode<synchronous>, transform_indices = @transform_1, window_bounds = array<i64: 3, 64, 64>}, {transform_indices = @transform_2, window_bounds = array<i64: 1, 16, 64>}, {transform_indices = @transform_3, window_bounds = array<i64: 1, 2, 64>}]} {
    %c0 = arith.constant 0 : index
    %c0_0 = arith.constant 0 : index
    %c0_1 = arith.constant 0 : index
    %0 = vector.load %arg1[%c0, %c0_0, %c0_1] : memref<1x18x64xf32, #tpu.memory_space<vmem>>, vector<1x18x64xf32>
    %1 = vector.shape_cast %0 : vector<1x18x64xf32> to vector<18x64xf32>
    %2 = arith.truncf %1 : vector<18x64xf32> to vector<18x64xbf16>
    %3 = vector.extract_strided_slice %2 {offsets = [0, 0], sizes = [16, 64], strides = [1, 1]} : vector<18x64xbf16> to vector<16x64xbf16>
    %c0_2 = arith.constant 0 : index
    %c0_3 = arith.constant 0 : index
    %c0_4 = arith.constant 0 : index
    %4 = vector.load %arg2[%c0_2, %c0_3, %c0_4] : memref<3x64x64xbf16, #tpu.memory_space<vmem>>, vector<1x64x64xbf16>
    %5 = vector.shape_cast %4 : vector<1x64x64xbf16> to vector<64x64xbf16>
    %cst = arith.constant dense<0.000000e+00> : vector<16x64xf32>
    %6 = tpu.matmul %3, %5, %cst {dimension_numbers = #tpu.dot_dimension_numbers<[1], [0], [0], [1], [0, 0, 1, 1], [], []>} : vector<16x64xbf16>, vector<64x64xbf16>, vector<16x64xf32> -> vector<16x64xf32>
    %7 = vector.extract_strided_slice %2 {offsets = [1, 0], sizes = [16, 64], strides = [1, 1]} : vector<18x64xbf16> to vector<16x64xbf16>
    %c1 = arith.constant 1 : index
    %c0_5 = arith.constant 0 : index
    %c0_6 = arith.constant 0 : index
    %8 = vector.load %arg2[%c1, %c0_5, %c0_6] : memref<3x64x64xbf16, #tpu.memory_space<vmem>>, vector<1x64x64xbf16>
    %9 = vector.shape_cast %8 : vector<1x64x64xbf16> to vector<64x64xbf16>
    %cst_7 = arith.constant dense<0.000000e+00> : vector<16x64xf32>
    %10 = tpu.matmul %7, %9, %cst_7 {dimension_numbers = #tpu.dot_dimension_numbers<[1], [0], [0], [1], [0, 0, 1, 1], [], []>} : vector<16x64xbf16>, vector<64x64xbf16>, vector<16x64xf32> -> vector<16x64xf32>
    %11 = arith.addf %6, %10 : vector<16x64xf32>
    %12 = vector.extract_strided_slice %2 {offsets = [2, 0], sizes = [16, 64], strides = [1, 1]} : vector<18x64xbf16> to vector<16x64xbf16>
    %c2 = arith.constant 2 : index
    %c0_8 = arith.constant 0 : index
    %c0_9 = arith.constant 0 : index
    %13 = vector.load %arg2[%c2, %c0_8, %c0_9] : memref<3x64x64xbf16, #tpu.memory_space<vmem>>, vector<1x64x64xbf16>
    %14 = vector.shape_cast %13 : vector<1x64x64xbf16> to vector<64x64xbf16>
    %cst_10 = arith.constant dense<0.000000e+00> : vector<16x64xf32>
    %15 = tpu.matmul %12, %14, %cst_10 {dimension_numbers = #tpu.dot_dimension_numbers<[1], [0], [0], [1], [0, 0, 1, 1], [], []>} : vector<16x64xbf16>, vector<64x64xbf16>, vector<16x64xf32> -> vector<16x64xf32>
    %16 = arith.addf %11, %15 : vector<16x64xf32>
    %c0_11 = arith.constant 0 : index
    %c0_12 = arith.constant 0 : index
    %c0_13 = arith.constant 0 : index
    %17 = vector.load %arg3[%c0_11, %c0_12, %c0_13] : memref<1x16x64xf32, #tpu.memory_space<vmem>>, vector<1x16x64xf32>
    %18 = vector.shape_cast %17 : vector<1x16x64xf32> to vector<16x64xf32>
    %19 = vector.shape_cast %16 : vector<16x64xf32> to vector<1x16x64xf32>
    tpu.vector_store %arg3[%c0_11, %c0_12, %c0_13], %19 {strides = array<i32>} : memref<1x16x64xf32, #tpu.memory_space<vmem>>, vector<1x16x64xf32>,
    %cst_14 = arith.constant dense<0.000000e+00> : vector<64xf32>
    %20 = vector.multi_reduction <add>, %16, %cst_14 [0] : vector<16x64xf32> to vector<64xf32>
    %21 = vector.shape_cast %20 : vector<64xf32> to vector<1x64xf32>
    %c0_15 = arith.constant 0 : index
    %c0_16 = arith.constant 0 : index
    %c0_17 = arith.constant 0 : index
    %22 = vector.load %arg4[%c0_15, %c0_16, %c0_17] : memref<1x2x64xf32, #tpu.memory_space<vmem>>, vector<1x1x64xf32>
    %23 = vector.shape_cast %22 : vector<1x1x64xf32> to vector<1x64xf32>
    %24 = vector.shape_cast %21 : vector<1x64xf32> to vector<1x1x64xf32>
    tpu.vector_store %arg4[%c0_15, %c0_16, %c0_17], %24 {strides = array<i32>} : memref<1x2x64xf32, #tpu.memory_space<vmem>>, vector<1x1x64xf32>,
    %25 = arith.mulf %16, %16 : vector<16x64xf32>
    %cst_18 = arith.constant dense<0.000000e+00> : vector<64xf32>
    %26 = vector.multi_reduction <add>, %25, %cst_18 [0] : vector<16x64xf32> to vector<64xf32>
    %27 = vector.shape_cast %26 : vector<64xf32> to vector<1x64xf32>
    %c0_19 = arith.constant 0 : index
    %c1_20 = arith.constant 1 : index
    %c0_21 = arith.constant 0 : index
    %28 = vector.load %arg4[%c0_19, %c1_20, %c0_21] : memref<1x2x64xf32, #tpu.memory_space<vmem>>, vector<1x1x64xf32>
    %29 = vector.shape_cast %28 : vector<1x1x64xf32> to vector<1x64xf32>
    %30 = vector.shape_cast %27 : vector<1x64xf32> to vector<1x1x64xf32>
    tpu.vector_store %arg4[%c0_19, %c1_20, %c0_21], %30 {strides = array<i32>} : memref<1x2x64xf32, #tpu.memory_space<vmem>>, vector<1x1x64xf32>,
    return
  }
  func.func @transform_0(%arg0: i32) -> (i32, i32, i32) {
    %c0_i32 = arith.constant 0 : i32
    %c0_i32_0 = arith.constant 0 : i32
    %c0_i32_1 = arith.constant 0 : i32
    return %arg0, %c0_i32, %c0_i32_0 : i32, i32, i32
  }
  func.func @transform_1(%arg0: i32) -> (i32, i32, i32) {
    %c0_i32 = arith.constant 0 : i32
    %c0_i32_0 = arith.constant 0 : i32
    %c0_i32_1 = arith.constant 0 : i32
    %c0_i32_2 = arith.constant 0 : i32
    return %c0_i32, %c0_i32_0, %c0_i32_1 : i32, i32, i32
  }
  func.func @transform_2(%arg0: i32) -> (i32, i32, i32) {
    %c0_i32 = arith.constant 0 : i32
    %c0_i32_0 = arith.constant 0 : i32
    %c0_i32_1 = arith.constant 0 : i32
    return %arg0, %c0_i32, %c0_i32_0 : i32, i32, i32
  }
  func.func @transform_3(%arg0: i32) -> (i32, i32, i32) {
    %c0_i32 = arith.constant 0 : i32
    %c0_i32_0 = arith.constant 0 : i32
    %c0_i32_1 = arith.constant 0 : i32
    return %arg0, %c0_i32, %c0_i32_0 : i32, i32, i32
  }
}

</mosaic_0001>

<llo_original>
// kernel: tpu_custom_call.1
$region0: #{tpu_custom_call.1}
  #allocation0 [shape = 'u32[]', space=smem, size = 0x4, offset = 0x4, fixed_abs, tag = 'smem constant byte address 0x4 - core index']
  #allocation1 [shape = 'u32[144,128]{1,0:T(1,128)}', space=vmem, size = 0x12000, scoped, tag = 'internal scratch']
  %s0 = inlined_call_operand.vmem [shape: f32[2,18,64], index: 0, kind: input, shape index: {}]
  %s1 = inlined_call_operand.hbm [shape: bf16[3,64,64], index: 1, kind: input, shape index: {}]
  %s2 = inlined_call_operand.hbm [shape: f32[2,16,64], index: 2, kind: output, shape index: {0}]
  %s3 = inlined_call_operand.hbm [shape: f32[2,2,64], index: 3, kind: output, shape index: {1}]
  %4 = xla_tuple %s2, %s3
  %s5 = sld [smem:[#allocation0]]
  $region53: #{tpu_custom_call.1} parent=0
    _
  %s7 = ssub.s32 1, %s5
  %s8 = scalar_select 0, %s7, %s5
  $region1: #{tpu_custom_call.1} parent=0
    #allocation2 [shape = 'u8[49152]{0}', space=vmem, size = 0xc000, scoped, tag = 'input window, operand 1, single buffered']
    #allocation3 [shape = 's32[2]{0}', space=sflag, size = 0x8, scoped, tag = 'scoped memory for tpu_custom_call.1']
    #allocation4 [shape = 's32[2]{0}', space=sflag, size = 0x8, scoped, tag = 'scoped memory for tpu_custom_call.1']
    #allocation5 [shape = 'u8[16384]{0}', space=vmem, size = 0x4000, scoped, tag = 'output window, operand 0']
    #allocation6 [shape = 'u8[2048]{0}', space=vmem, size = 0x800, scoped, tag = 'output window, operand 1']
    #allocation7 [shape = 's32[2]{0}', space=sflag, size = 0x8, scoped, tag = 'scoped memory for tpu_custom_call.1']
    %9 = vsyncpa [#allocation3], 0
    %10 = vsyncpa [#allocation4], 0
    %s11 = scalar_lea.sflag [#allocation4], 1
    %12 = vsyncpa %s11, 0
    %13 = vsyncpa [#allocation7], 0
    %s14 = scalar_lea.sflag [#allocation7], 1
    %15 = vsyncpa %s14, 0
    loop: start=0, step=1, limit=4
    $region2: #{tpu_custom_call.1} parent=1 // loop_pre_header
      _
    $region3: #{tpu_custom_call.1} parent=1 // loop_header
      %s17 = sphi 0, %s21
      %p18 = scmp.ge.s32.totalorder %s17, 4
      %s27 = sphi 0, %s29
      %s30 = sphi 0, %s27
      %s31 = sphi 0, %s30
      %s47 = sphi 0, %s31
      %s51 = sphi 0, %s51
      %s53 = sphi 0, %s51
      %s54 = sphi 0, %s53
      %s68 = sphi 0, %s54
      %s74 = sphi 0, %s76
      %s77 = sphi 0, %s74
      %s78 = sphi 0, %s77
      %s94 = sphi 0, %s78
      %s100 = sphi 0, %s102
      %s103 = sphi 0, %s100
      %s104 = sphi 0, %s103
      %s120 = sphi 0, %s104
    $region4: #{tpu_custom_call.1} parent=1 // loop_header_branch
      %20 = sbr.rel (%p18) target = $region8
    $region5: #{tpu_custom_call.1} parent=1 // loop_body
      %s22 = ssub.s32 %s17, 1
      %s23 = ssub.s32 %s17, 2
      %s24 = sadd.s32 %s17, 1
      %s25 = ssub.s32 %s17, %s24
      %p26 = scmp.eq.s32.totalorder %s25, 0
      %s28 = sadd.s32 %s27, 1
      %s29 = scalar_select %p26, %s27, %s28
      %p32 = pneg %p26
      %p33 = scmp.eq.s32.totalorder %s17, 1
      %p34 = por %p32, %p33
      %p35 = scmp.ne.s32.totalorder %s27, %s30
      %p36 = scmp.eq.s32.totalorder %s17, 0
      %p37 = por %p35, %p36
      %p38 = scmp.ne.s32.totalorder %s27, %s30
      %p39 = scmp.eq.s32.totalorder %s22, 1
      %p40 = por %p38, %p39
      %p41 = scmp.ne.s32.totalorder %s30, %s31
      %p42 = scmp.eq.s32.totalorder %s22, 0
      %p43 = por %p41, %p42
      %p44 = scmp.ne.s32.totalorder %s30, %s31
      %p45 = scmp.eq.s32.totalorder %s23, 1
      %p46 = por %p44, %p45
      %p48 = scmp.ne.s32.totalorder %s31, %s47
      %p49 = scmp.eq.s32.totalorder %s23, 0
      %p50 = por %p48, %p49
      %s52 = sadd.s32 %s51, 1
      %p55 = scmp.eq.s32.totalorder %s17, 1
      %p56 = scmp.ne.s32.totalorder %s51, %s53
      %p57 = scmp.eq.s32.totalorder %s17, 0
      %p58 = por %p56, %p57
      %p59 = scmp.ne.s32.totalorder %s51, %s53
      %p60 = scmp.eq.s32.totalorder %s22, 1
      %p61 = por %p59, %p60
      %p62 = scmp.ne.s32.totalorder %s53, %s54
      %p63 = scmp.eq.s32.totalorder %s22, 0
      %p64 = por %p62, %p63
      %p65 = scmp.ne.s32.totalorder %s53, %s54
      %p66 = scmp.eq.s32.totalorder %s23, 1
      %p67 = por %p65, %p66
      %p69 = scmp.ne.s32.totalorder %s54, %s68
      %p70 = scmp.eq.s32.totalorder %s23, 0
      %p71 = por %p69, %p70
      %s72 = ssub.s32 %s17, %s24
      %p73 = scmp.eq.s32.totalorder %s72, 0
      %s75 = sadd.s32 %s74, 1
      %s76 = scalar_select %p73, %s74, %s75
      %p79 = pneg %p73
      %p80 = scmp.eq.s32.totalorder %s17, 1
      %p81 = por %p79, %p80
      %p82 = scmp.ne.s32.totalorder %s74, %s77
      %p83 = scmp.eq.s32.totalorder %s17, 0
      %p84 = por %p82, %p83
      %p85 = scmp.ne.s32.totalorder %s74, %s77
      %p86 = scmp.eq.s32.totalorder %s22, 1
      %p87 = por %p85, %p86
      %p88 = scmp.ne.s32.totalorder %s77, %s78
      %p89 = scmp.eq.s32.totalorder %s22, 0
      %p90 = por %p88, %p89
      %p91 = scmp.ne.s32.totalorder %s77, %s78
      %p92 = scmp.eq.s32.totalorder %s23, 1
      %p93 = por %p91, %p92
      %p95 = scmp.ne.s32.totalorder %s78, %s94
      %p96 = scmp.eq.s32.totalorder %s23, 0
      %p97 = por %p95, %p96
      %s98 = ssub.s32 %s17, %s24
      %p99 = scmp.eq.s32.totalorder %s98, 0
      %s101 = sadd.s32 %s100, 1
      %s102 = scalar_select %p99, %s100, %s101
      %p105 = pneg %p99
      %p106 = scmp.eq.s32.totalorder %s17, 1
      %p107 = por %p105, %p106
      %p108 = scmp.ne.s32.totalorder %s100, %s103
      %p109 = scmp.eq.s32.totalorder %s17, 0
      %p110 = por %p108, %p109
      %p111 = scmp.ne.s32.totalorder %s100, %s103
      %p112 = scmp.eq.s32.totalorder %s22, 1
      %p113 = por %p111, %p112
      %p114 = scmp.ne.s32.totalorder %s103, %s104
      %p115 = scmp.eq.s32.totalorder %s22, 0
      %p116 = por %p114, %p115
      %p117 = scmp.ne.s32.totalorder %s103, %s104
      %p118 = scmp.eq.s32.totalorder %s23, 1
      %p119 = por %p117, %p118
      %p121 = scmp.ne.s32.totalorder %s104, %s120
      %p122 = scmp.eq.s32.totalorder %s23, 0
      %p123 = por %p121, %p122
      %p124 = scmp.le.s32.totalorder 1, %s17
      %p125 = scmp.lt.s32.totalorder %s17, 3
      %p126 = pnand %p124, %p125
      %p127 = pneg %p126
      // Predicated region
      $region9: #{tpu_custom_call.1} parent=5 // pred_check
        _
      $region10: #{tpu_custom_call.1} parent=5 // pred_check_branch
        %129 = sbr.rel (%p126) target = $region12
      $region11: #{tpu_custom_call.1} parent=5 // pred_region
        %s130 = ssub.s32 %s17, 1
        // Predicated region
        $region13: #{tpu_custom_call.1} parent=11 // pred_check
          %p131 = pneg %p64
        $region14: #{tpu_custom_call.1} parent=11 // pred_check_branch
          %133 = sbr.rel (%p131) target = $region16
        $region15: #{tpu_custom_call.1} parent=11 // pred_region
          %s135 = ssub.s32 1536, 1536
          %136 = vsyncadd [#allocation3], %s135
          %s137 = sshll.u32 [#allocation2], 4
          %s138 = int_to_ptr.vmem [resolvable:$true] %s137
          %143 = dma.hbm_to_vmem [thread:$0]  %s1, 1536, %s138, [#allocation3], 64, 64, 4
        $region16: #{tpu_custom_call.1} parent=11 // pred_fallthru
          _
      $region12: #{tpu_custom_call.1} parent=5 // pred_fallthru
        _
      %p144 = scmp.lt.s32.totalorder %s17, 2
      // Predicated region
      $region17: #{tpu_custom_call.1} parent=5 // pred_check
        %p145 = pneg %p144
      $region18: #{tpu_custom_call.1} parent=5 // pred_check_branch
        %147 = sbr.rel (%p145) target = $region20
      $region19: #{tpu_custom_call.1} parent=5 // pred_region
        // Predicated region
        $region21: #{tpu_custom_call.1} parent=19 // pred_check
          %p148 = pneg %p37
        $region22: #{tpu_custom_call.1} parent=19 // pred_check_branch
          %150 = sbr.rel (%p148) target = $region24
        $region23: #{tpu_custom_call.1} parent=19 // pred_region
          %p151 = scmp.lt.s32.totalorder %s17, 1
          %s152 = scalar_select %p151, %s17, 1
          %s153 = smul.addr %s152, 3
          %s154 = smul.addr %s153, 8
          %s155 = scalar_lea.vmem %s0, %s154
        $region24: #{tpu_custom_call.1} parent=19 // pred_fallthru
          _
      $region20: #{tpu_custom_call.1} parent=5 // pred_fallthru
        _
      %p156 = scmp.le.s32.totalorder 1, %s17
      %p157 = scmp.lt.s32.totalorder %s17, 3
      %p158 = pnand %p156, %p157
      %p159 = pneg %p158
      // Predicated region
      $region25: #{tpu_custom_call.1} parent=5 // pred_check
        _
      $region26: #{tpu_custom_call.1} parent=5 // pred_check_branch
        %161 = sbr.rel (%p158) target = $region28
      $region27: #{tpu_custom_call.1} parent=5 // pred_region
        %s162 = ssub.s32 %s17, 1
        // Predicated region
        $region29: #{tpu_custom_call.1} parent=27 // pred_check
          %p163 = pneg %p64
        $region30: #{tpu_custom_call.1} parent=27 // pred_check_branch
          %165 = sbr.rel (%p163) target = $region32
        $region31: #{tpu_custom_call.1} parent=27 // pred_region
          %166 = dma.done [#allocation3], 1536
        $region32: #{tpu_custom_call.1} parent=27 // pred_fallthru
          _
        %p167 = scmp.lt.s32.totalorder %s22, 1
        %s168 = scalar_select %p167, %s22, 1
        %s169 = smul.addr %s168, 3
        %s170 = smul.addr %s169, 8
        %s171 = scalar_lea.vmem %s0, %s170
        %p172 = pneg %p43
        %p173 = pneg %p40
        %p174 = pneg %p64
        %p175 = pneg %p61
        %p176 = pneg %p90
        %p177 = pneg %p87
        %s178 = sand.u32 %s77, 1
        %s179 = scalar_lea.sflag [#allocation4], %s178
        %s180 = sand.u32 %s77, 1
        %s181 = smul.addr %s180, 16
        %s182 = scalar_lea.vmem [#allocation5], %s181
        %p183 = pneg %p116
        %p184 = pneg %p113
        %s185 = sand.u32 %s103, 1
        %s186 = scalar_lea.sflag [#allocation7], %s185
        %s187 = sand.u32 %s103, 1
        %s188 = smul.addr %s187, 2
        %s189 = scalar_lea.vmem [#allocation6], %s188
        %p190 = scmp.lt.s32.totalorder %s22, 1
        %s191 = scalar_select %p190, %s22, 1
        %s192 = smul.addr %s191, 3
        %s193 = smul.addr %s192, 8
        %s194 = scalar_lea.vmem %s0, %s193
        %v196 = vld [vmem:[%s194] sm:$0xff]
        %v197 = vld [vmem:[%s194 + $0x8] sm:$0xff]
        %v198 = vld [vmem:[%s194 + $0x10] sm:$0x3]
        %v199 = vpack.c.bf16 %v197, %v196
        %v200 = vpack.c.bf16 %v198, %v198
        %v201 = vld [vmem:[#allocation2] sm:$0xf]
        %v202 = vld [vmem:[#allocation2 + $0x4] sm:$0xf]
        %v203 = vld [vmem:[#allocation2 + $0x8] sm:$0xf]
        %v204 = vld [vmem:[#allocation2 + $0xc] sm:$0xf]
        %v205 = vld [vmem:[#allocation2 + $0x10] sm:$0xf]
        %v206 = vld [vmem:[#allocation2 + $0x14] sm:$0xf]
        %v207 = vld [vmem:[#allocation2 + $0x18] sm:$0xf]
        %v208 = vld [vmem:[#allocation2 + $0x1c] sm:$0xf]
        %s209 = scalar_lea.vmem [#allocation2], 32
        %v210 = vld [vmem:[%s209] sm:$0xf]
        %v211 = vld [vmem:[%s209 + $0x4] sm:$0xf]
        %v212 = vld [vmem:[%s209 + $0x8] sm:$0xf]
        %v213 = vld [vmem:[%s209 + $0xc] sm:$0xf]
        %v214 = vld [vmem:[%s209 + $0x10] sm:$0xf]
        %v215 = vld [vmem:[%s209 + $0x14] sm:$0xf]
        %v216 = vld [vmem:[%s209 + $0x18] sm:$0xf]
        %v217 = vld [vmem:[%s209 + $0x1c] sm:$0xf]
        %vm218 = vsmask.f32 7424
        %v220 = vshrl.u32 %v199, 16
        %v222 = vshll.u32 %v199, 16
        %v224 = vrot.slane %v222, 1
        %v225 = vor.u32 %v220, %v224
        %v227 = vshll.u32 %v200, 16
        %v229 = vrot.slane %v227, 1
        %v230 = vsel %vm218, %v225, %v229
        %v239 = vunpack.c.l.b16 %v210
        %v240 = vunpack.c.l.b16 %v211
        %v241 = vunpack.c.l.b16 %v212
        %v242 = vunpack.c.l.b16 %v213
        %v243 = vunpack.c.l.b16 %v214
        %v244 = vunpack.c.l.b16 %v215
        %v245 = vunpack.c.l.b16 %v216
        %v246 = vunpack.c.l.b16 %v217
        %v247 = vpack.c.b16 %v240, %v239
        %v248 = vpack.c.b16 %v242, %v241
        %v249 = vpack.c.b16 %v244, %v243
        %v250 = vpack.c.b16 %v246, %v245
        %vm255 = vcmask 523264
        %v257 = vsel %vm255, %v230, 0
        %259 = vmatprep.subr.bf16.mxu0 0
        %260 = vmatpush1.bf16.msra.mxu0 0
        %261 = vmatprep.subr.bf16.mxu0 0
        %262 = vmatpush1.bf16.msra.mxu0 0
        %263 = vmatprep.subr.bf16.mxu0 0
        %264 = vmatpush1.bf16.msra.mxu0 0
        %265 = vmatprep.subr.bf16.mxu0 0
        %266 = vmatpush1.bf16.msra.mxu0 0
        %267 = vmatprep.subr.bf16.mxu0 0
        %268 = vmatpush1.bf16.msra.mxu0 %v250
        %269 = vmatprep.subr.bf16.mxu0 0
        %270 = vmatpush1.bf16.msra.mxu0 %v249
        %271 = vmatprep.subr.bf16.mxu0 0
        %272 = vmatpush1.bf16.msra.mxu0 %v248
        %273 = vmatprep.subr.bf16.mxu0 0
        %274 = vmatpush1.bf16.msra.mxu0 %v247
        %275 = vmatprep.subr.bf16.mxu0 0
        %276 = vmatpush2.bf16.msra.mxu0 0
        %277 = vmatprep.subr.bf16.mxu0 0
        %278 = vmatpush2.bf16.msra.mxu0 0
        %279 = vmatprep.subr.bf16.mxu0 0
        %280 = vmatpush2.bf16.msra.mxu0 0
        %281 = vmatprep.subr.bf16.mxu0 0
        %282 = vmatpush2.bf16.msra.mxu0 0
        %283 = vmatprep.subr.bf16.mxu0 0
        %284 = vmatpush2.bf16.msra.mxu0 0
        %285 = vmatprep.subr.bf16.mxu0 0
        %286 = vmatpush2.bf16.msra.mxu0 0
        %287 = vmatprep.subr.bf16.mxu0 0
        %288 = vmatpush2.bf16.msra.mxu0 0
        %289 = vmatprep.subr.bf16.mxu0 0
        %290 = vmatpush2.bf16.msra.mxu0 0
        %291 = vmatprep.mubr.bf16.mxu0 0
        %292 = vmatmul.mubr.bf16.gmra.mxu0 %v257
        %v293 = vpop.f32.mrf.mxu0
        %v294 = vadd.f32 0.0, %v293
        %v295 = vpop.f32.mrf.mxu0
        %v296 = vpop.f32.mrf.mxu0
        %v297 = vadd.f32 0.0, %v296
        %v298 = vpop.f32.mrf.mxu0
        %299 = vdwg.mxu0
        %v308 = vunpack.c.l.b16 %v201
        %v309 = vunpack.c.l.b16 %v202
        %v310 = vunpack.c.l.b16 %v203
        %v311 = vunpack.c.l.b16 %v204
        %v312 = vunpack.c.l.b16 %v205
        %v313 = vunpack.c.l.b16 %v206
        %v314 = vunpack.c.l.b16 %v207
        %v315 = vunpack.c.l.b16 %v208
        %v316 = vpack.c.b16 %v309, %v308
        %v317 = vpack.c.b16 %v311, %v310
        %v318 = vpack.c.b16 %v313, %v312
        %v319 = vpack.c.b16 %v315, %v314
        %v324 = vsel %vm255, %v199, 0
        %326 = vmatprep.subr.bf16.mxu0 0
        %327 = vmatpush1.bf16.msra.mxu0 0
        %328 = vmatprep.subr.bf16.mxu0 0
        %329 = vmatpush1.bf16.msra.mxu0 0
        %330 = vmatprep.subr.bf16.mxu0 0
        %331 = vmatpush1.bf16.msra.mxu0 0
        %332 = vmatprep.subr.bf16.mxu0 0
        %333 = vmatpush1.bf16.msra.mxu0 0
        %334 = vmatprep.subr.bf16.mxu0 0
        %335 = vmatpush1.bf16.msra.mxu0 %v319
        %336 = vmatprep.subr.bf16.mxu0 0
        %337 = vmatpush1.bf16.msra.mxu0 %v318
        %338 = vmatprep.subr.bf16.mxu0 0
        %339 = vmatpush1.bf16.msra.mxu0 %v317
        %340 = vmatprep.subr.bf16.mxu0 0
        %341 = vmatpush1.bf16.msra.mxu0 %v316
        %342 = vmatprep.subr.bf16.mxu0 0
        %343 = vmatpush2.bf16.msra.mxu0 0
        %344 = vmatprep.subr.bf16.mxu0 0
        %345 = vmatpush2.bf16.msra.mxu0 0
        %346 = vmatprep.subr.bf16.mxu0 0
        %347 = vmatpush2.bf16.msra.mxu0 0
        %348 = vmatprep.subr.bf16.mxu0 0
        %349 = vmatpush2.bf16.msra.mxu0 0
        %350 = vmatprep.subr.bf16.mxu0 0
        %351 = vmatpush2.bf16.msra.mxu0 0
        %352 = vmatprep.subr.bf16.mxu0 0
        %353 = vmatpush2.bf16.msra.mxu0 0
        %354 = vmatprep.subr.bf16.mxu0 0
        %355 = vmatpush2.bf16.msra.mxu0 0
        %356 = vmatprep.subr.bf16.mxu0 0
        %357 = vmatpush2.bf16.msra.mxu0 0
        %358 = vmatprep.mubr.bf16.mxu0 0
        %359 = vmatmul.mubr.bf16.gmra.mxu0 %v324
        %v360 = vpop.f32.mrf.mxu0
        %v361 = vadd.f32 %v294, %v360
        %v362 = vpop.f32.mrf.mxu0
        %v363 = vpop.f32.mrf.mxu0
        %v364 = vadd.f32 %v297, %v363
        %v365 = vpop.f32.mrf.mxu0
        %366 = vdwg.mxu0
        %s367 = scalar_lea.vmem [#allocation2], 64
        %v368 = vld [vmem:[%s367] sm:$0xf]
        %v369 = vld [vmem:[%s367 + $0x4] sm:$0xf]
        %v370 = vld [vmem:[%s367 + $0x8] sm:$0xf]
        %v371 = vld [vmem:[%s367 + $0xc] sm:$0xf]
        %v372 = vld [vmem:[%s367 + $0x10] sm:$0xf]
        %v373 = vld [vmem:[%s367 + $0x14] sm:$0xf]
        %v374 = vld [vmem:[%s367 + $0x18] sm:$0xf]
        %v375 = vld [vmem:[%s367 + $0x1c] sm:$0xf]
        %vm378 = vcmask 1046528
        %v379 = vrot.slane %v199, 1
        %v380 = vrot.slane %v200, 1
        %v381 = vsel %vm378, %v379, %v380
        %v390 = vunpack.c.l.b16 %v368
        %v391 = vunpack.c.l.b16 %v369
        %v392 = vunpack.c.l.b16 %v370
        %v393 = vunpack.c.l.b16 %v371
        %v394 = vunpack.c.l.b16 %v372
        %v395 = vunpack.c.l.b16 %v373
        %v396 = vunpack.c.l.b16 %v374
        %v397 = vunpack.c.l.b16 %v375
        %v398 = vpack.c.b16 %v391, %v390
        %v399 = vpack.c.b16 %v393, %v392
        %v400 = vpack.c.b16 %v395, %v394
        %v401 = vpack.c.b16 %v397, %v396
        %v407 = vsel %vm255, %v381, 0
        %409 = vmatprep.subr.bf16.mxu0 0
        %410 = vmatpush1.bf16.msra.mxu0 0
        %411 = vmatprep.subr.bf16.mxu0 0
        %412 = vmatpush1.bf16.msra.mxu0 0
        %413 = vmatprep.subr.bf16.mxu0 0
        %414 = vmatpush1.bf16.msra.mxu0 0
        %415 = vmatprep.subr.bf16.mxu0 0
        %416 = vmatpush1.bf16.msra.mxu0 0
        %417 = vmatprep.subr.bf16.mxu0 0
        %418 = vmatpush1.bf16.msra.mxu0 %v401
        %419 = vmatprep.subr.bf16.mxu0 0
        %420 = vmatpush1.bf16.msra.mxu0 %v400
        %421 = vmatprep.subr.bf16.mxu0 0
        %422 = vmatpush1.bf16.msra.mxu0 %v399
        %423 = vmatprep.subr.bf16.mxu0 0
        %424 = vmatpush1.bf16.msra.mxu0 %v398
        %425 = vmatprep.subr.bf16.mxu0 0
        %426 = vmatpush2.bf16.msra.mxu0 0
        %427 = vmatprep.subr.bf16.mxu0 0
        %428 = vmatpush2.bf16.msra.mxu0 0
        %429 = vmatprep.subr.bf16.mxu0 0
        %430 = vmatpush2.bf16.msra.mxu0 0
        %431 = vmatprep.subr.bf16.mxu0 0
        %432 = vmatpush2.bf16.msra.mxu0 0
        %433 = vmatprep.subr.bf16.mxu0 0
        %434 = vmatpush2.bf16.msra.mxu0 0
        %435 = vmatprep.subr.bf16.mxu0 0
        %436 = vmatpush2.bf16.msra.mxu0 0
        %437 = vmatprep.subr.bf16.mxu0 0
        %438 = vmatpush2.bf16.msra.mxu0 0
        %439 = vmatprep.subr.bf16.mxu0 0
        %440 = vmatpush2.bf16.msra.mxu0 0
        %441 = vmatprep.mubr.bf16.mxu0 0
        %442 = vmatmul.mubr.bf16.gmra.mxu0 %v407
        %v443 = vpop.f32.mrf.mxu0
        %v444 = vadd.f32 0.0, %v443
        %v445 = vpop.f32.mrf.mxu0
        %v446 = vpop.f32.mrf.mxu0
        %v447 = vadd.f32 0.0, %v446
        %v448 = vpop.f32.mrf.mxu0
        %449 = vdwg.mxu0
        %v450 = vadd.f32 %v361, %v444
        %v451 = vadd.f32 %v364, %v447
        %452 = vst.msk [vmem:[%s182] sm:$0xff] %vm255, %v450
        %453 = vst.msk [vmem:[%s182 + $0x8] sm:$0xff] %vm255, %v451
        %v454 = vsel %vm255, %v450, 0.0
        %v455 = vsel %vm255, %v451, 0.0
        %v456 = vadd.f32 %v454, %v455
        %v457 = vrot.slane %v456, 4
        %v458 = vadd.f32 %v456, %v457
        %v459 = vrot.slane %v458, 2
        %v460 = vadd.f32 %v458, %v459
        %v461 = vrot.slane %v460, 1
        %v462 = vadd.f32 %v460, %v461
        %vm463 = vcmask 516096
        %464 = vst.msk [vmem:[%s189] sm:$0x1] %vm463, %v462
        %v465 = vmul.f32 %v450, %v450
        %v466 = vmul.f32 %v451, %v451
        %v467 = vsel %vm255, %v465, 0.0
        %v468 = vsel %vm255, %v466, 0.0
        %v469 = vadd.f32 %v467, %v468
        %v470 = vrot.slane %v469, 4
        %v471 = vadd.f32 %v469, %v470
        %v472 = vrot.slane %v471, 2
        %v473 = vadd.f32 %v471, %v472
        %v474 = vrot.slane %v473, 1
        %v475 = vadd.f32 %v473, %v474
        %476 = vst.msk [vmem:[%s189 + $0x1] sm:$0x1] %vm463, %v475
        %s477 = sand.u32 %s77, 1
        %s478 = scalar_lea.sflag [#allocation4], %s477
        %s479 = sand.u32 %s77, 1
        %s480 = smul.addr %s479, 16
        %s481 = scalar_lea.vmem [#allocation5], %s480
        %s482 = sand.u32 %s103, 1
        %s483 = scalar_lea.sflag [#allocation7], %s482
        %s484 = sand.u32 %s103, 1
        %s485 = smul.addr %s484, 2
        %s486 = scalar_lea.vmem [#allocation6], %s485
        // Predicated region
        $region33: #{tpu_custom_call.1} parent=27 // pred_check
          %p487 = pneg %p87
        $region34: #{tpu_custom_call.1} parent=27 // pred_check_branch
          %489 = sbr.rel (%p487) target = $region36
        $region35: #{tpu_custom_call.1} parent=27 // pred_region
          %s491 = ssub.s32 256, 256
          %492 = vsyncadd %s478, %s491
          %s493 = smul.addr %s22, 2
          %s494 = smul.addr %s493, 128
          %s495 = scalar_lea.hbm %s2, %s494
          %s496 = sshll.u32 %s481, 4
          %s497 = int_to_ptr.vmem [resolvable:$true] %s496
          %502 = dma.vmem_to_hbm [thread:$0]  %s497, 256, %s495, %s478, 128, 128, 8
        $region36: #{tpu_custom_call.1} parent=27 // pred_fallthru
          _
        // Predicated region
        $region37: #{tpu_custom_call.1} parent=27 // pred_check
          %p503 = pneg %p113
        $region38: #{tpu_custom_call.1} parent=27 // pred_check_branch
          %505 = sbr.rel (%p503) target = $region40
        $region39: #{tpu_custom_call.1} parent=27 // pred_region
          %s507 = ssub.s32 32, 32
          %508 = vsyncadd %s483, %s507
          %s509 = smul.addr %s22, 32
          %s510 = scalar_lea.hbm %s3, %s509
          %s512 = sshll.u32 %s486, 4
          %s513 = int_to_ptr.vmem [resolvable:$true] %s512
          %515 = dma.vmem_to_hbm [thread:$0]  %s513, 32, %s510, %s483
        $region40: #{tpu_custom_call.1} parent=27 // pred_fallthru
          _
      $region28: #{tpu_custom_call.1} parent=5 // pred_fallthru
        _
      %p516 = scmp.le.s32.totalorder 2, %s17
      // Predicated region
      $region41: #{tpu_custom_call.1} parent=5 // pred_check
        %p517 = pneg %p516
      $region42: #{tpu_custom_call.1} parent=5 // pred_check_branch
        %519 = sbr.rel (%p517) target = $region44
      $region43: #{tpu_custom_call.1} parent=5 // pred_region
        %s520 = ssub.s32 %s17, 2
        // Predicated region
        $region45: #{tpu_custom_call.1} parent=43 // pred_check
          %p521 = pneg %p93
        $region46: #{tpu_custom_call.1} parent=43 // pred_check_branch
          %523 = sbr.rel (%p521) target = $region48
        $region47: #{tpu_custom_call.1} parent=43 // pred_region
          %s524 = sand.u32 %s78, 1
          %s525 = scalar_lea.sflag [#allocation4], %s524
          %s526 = sand.u32 %s78, 1
          %s527 = smul.addr %s526, 16
          %s528 = scalar_lea.vmem [#allocation5], %s527
          %529 = dma.done %s525, 256
        $region48: #{tpu_custom_call.1} parent=43 // pred_fallthru
          _
        // Predicated region
        $region49: #{tpu_custom_call.1} parent=43 // pred_check
          %p530 = pneg %p119
        $region50: #{tpu_custom_call.1} parent=43 // pred_check_branch
          %532 = sbr.rel (%p530) target = $region52
        $region51: #{tpu_custom_call.1} parent=43 // pred_region
          %s533 = sand.u32 %s104, 1
          %s534 = scalar_lea.sflag [#allocation7], %s533
          %s535 = sand.u32 %s104, 1
          %s536 = smul.addr %s535, 2
          %s537 = scalar_lea.vmem [#allocation6], %s536
          %538 = dma.done %s534, 32
        $region52: #{tpu_custom_call.1} parent=43 // pred_fallthru
          _
      $region44: #{tpu_custom_call.1} parent=5 // pred_fallthru
        _
    $region6: #{tpu_custom_call.1} parent=1 // loop_footer
      %s21 = sadd.s32 1, %s17
    $region7: #{tpu_custom_call.1} parent=1 // loop_footer_branch
      %16 = sbr.rel target = $region3
    $region8: #{tpu_custom_call.1} parent=1 // loop_exit
      _
    %539 = vsyncpa [#allocation3], 1
    %s540 = scalar_lea.sflag [#allocation3], 1
    %541 = vsyncpa %s540, 1
    %542 = vsyncpa [#allocation4], 1
    %s543 = scalar_lea.sflag [#allocation4], 1
    %544 = vsyncpa %s543, 1
    %545 = vsyncpa [#allocation7], 1
    %s546 = scalar_lea.sflag [#allocation7], 1
    %547 = vsyncpa %s546, 1

</llo_original>
